<compile_context>
chip_gen: v6e
topology: v6e:2x2x1
jax: 0.10.0
libtpu: 0.0.40
codegen_flags: <defaults>
</compile_context>

<pallas_src>
import functools

import jax
import jax.numpy as jnp
from jax.experimental import pallas as pl
from jax.experimental.pallas import tpu as pltpu


def ffn_kernel(x_ref, w1_ref, b1_ref, w2_ref, bgb_ref, o_ref, acc_ref, *,
               eps, d_real, d_pad, inv_d):
    """One (row-tile, H-tile) grid step of fc1 -> ReLU -> fc2 (+x, LayerNorm)."""
    k = pl.program_id(1)

    # MXU path in bf16 with f32 accumulation.
    x_bf16 = x_ref[...].astype(jnp.bfloat16)

    # fc1 partial for this H tile + bias + ReLU (ReLU is elementwise over H,
    # so tiling H is exact).
    h = jnp.dot(x_bf16, w1_ref[...], preferred_element_type=jnp.float32)
    h = jnp.maximum(h + b1_ref[...], 0.0)

    # fc2 partial, accumulated across H tiles in the f32 VMEM scratch.
    part = jnp.dot(h.astype(jnp.bfloat16), w2_ref[...],
                   preferred_element_type=jnp.float32)

    @pl.when(k == 0)
    def _():
        acc_ref[...] = jnp.zeros_like(acc_ref)

    acc_ref[...] += part

    @pl.when(k == pl.num_programs(1) - 1)
    def _():
        x_f32 = x_ref[...].astype(jnp.float32)
        b2 = bgb_ref[0:1, :]
        gamma = bgb_ref[1:2, :]
        beta = bgb_ref[2:3, :]

        # dropout(p=0.0) is the identity; bias + residual in f32.
        y = acc_ref[...] + b2 + x_f32

        # Two-pass LayerNorm over the REAL feature width.  Padded y columns are
        # exactly zero (zero-padded weights/biases/x), so the mean sum is exact;
        # mask them out of the centered term so the variance is exact too.
        mean = jnp.sum(y, axis=-1, keepdims=True) * inv_d
        yc = y - mean
        if d_pad != d_real:
            col = jax.lax.broadcasted_iota(jnp.int32, yc.shape, 1)
            yc = jnp.where(col < d_real, yc, 0.0)
        var = jnp.sum(yc * yc, axis=-1, keepdims=True) * inv_d
        y_norm = yc * jax.lax.rsqrt(var + eps)
        o_ref[...] = (y_norm * gamma + beta).astype(o_ref.dtype)


def _round_up(a, b):
    return (a + b - 1) // b * b


def _pad2(a, rows, cols):
    pr, pc = rows - a.shape[0], cols - a.shape[1]
    if pr == 0 and pc == 0:
        return a
    return jnp.pad(a, ((0, pr), (0, pc)))


def _pad1(a, n):
    p = n - a.shape[0]
    return a if p == 0 else jnp.pad(a, (0, p))


def position_wise_feed_forward(x, w1, b1, w2, b2, gamma, beta, *, eps=1e-5):
    """x: (B, S, D); fc weights stored as (in, out) so the kernel does x @ w."""
    B, S, D = x.shape
    H = w1.shape[1]
    M = B * S

    # Lane-dense feature dims (multiples of 128); no-op for typical model dims.
    Dp = _round_up(D, 128)
    Hp = _round_up(H, 128)

    itemsize = jnp.dtype(x.dtype).itemsize

    # --- hardware model ------------------------------------------------------
    dev_kind = ""
    try:
        dev_kind = jax.devices()[0].device_kind.lower()
    except Exception:  # pragma: no cover
        pass
    try:
        vmem_cap = int(pltpu.get_tpu_info().vmem_capacity_bytes)
    except Exception:  # pragma: no cover - older runtimes
        # v7x has 64 MiB VMEM per TensorCore; v5e/v6e have 128 MiB.
        vmem_cap = (64 << 20) if "v7" in dev_kind else (128 << 20)
    is_v5e = ("v5e" in dev_kind) or ("v5 lite" in dev_kind) or ("v5lite" in dev_kind)
    tm_floor = 128 if is_v5e else 256   # MXU: 4x128^2 (v5e) vs 2x256^2 (v6e/v7x)
    budget = int(0.75 * vmem_cap)

    # --- honest VMEM footprint model (includes in-kernel bf16 copies/LN temps)
    def footprint(tm, th, nbw):
        io = 2 * tm * Dp * itemsize * 2            # x + out tiles, double-buffered
        wts = nbw * 2 * Dp * th * 2                # w1 + w2 (bf16), nbw buffers each
        small = nbw * 8 * th * 4 + 2 * 8 * Dp * 4  # b1 and (3,Dp) pad to 8 sublanes
        acc = tm * Dp * 4                          # f32 accumulator scratch
        work = (tm * Dp * 2                        # x bf16 copy
                + tm * th * 6                      # h (f32 + bf16 cast)
                + 4 * tm * Dp * 4)                 # fc2 partial + LN temps
        return io + wts + small + acc + work

    m_cap = _round_up(M, 8)
    tm_base = min(tm_floor, m_cap)

    # H tile: keep both weights fully resident when that still allows a
    # tm >= tm_floor row tile; otherwise tile H (multiples of 128) instead of
    # starving the MXU with a tiny row tile.
    th_fit = 128
    for cand in range(Hp, 0, -128):
        if footprint(tm_base, cand, 1 if cand == Hp else 2) <= budget:
            th_fit = cand
            break
    if th_fit == Hp:
        th, k_steps, nbw = Hp, 1, 1
    else:
        k_steps = -(-Hp // th_fit)                 # ceil
        th = _round_up(-(-Hp // k_steps), 128)     # balanced, lane-dense H tiles
        Hp = th * k_steps
        nbw = 2

    # Row tile: largest that fits the budget, never above the real row count.
    tm = 8
    for cand in (2048, 1024, 768, 512, 384, 256, 192, 128, 96, 64, 48, 32, 16, 8):
        if cand <= m_cap and footprint(cand, th, nbw) <= budget:
            tm = cand
            break
    # Keep >= 2 row tiles (2 TensorCores on v7x + x/out DMA-compute overlap) as
    # long as that does not push tm below the MXU floor.
    if M >= 2 * tm_floor:
        tm = min(tm, _round_up((M + 1) // 2, 8))

    Mp = _round_up(M, tm)
    grid = (Mp // tm, k_steps)
    vmem_limit = int(min(vmem_cap,
                         max(footprint(tm, th, 2) + (16 << 20), 32 << 20)))

    # --- pad + precast parameters once (zero padding is exact) ---------------
    x2d = _pad2(x.reshape(M, D), Mp, Dp)
    w1p = _pad2(w1, Dp, Hp).astype(jnp.bfloat16)
    w2p = _pad2(w2, Hp, Dp).astype(jnp.bfloat16)
    b1p = _pad1(b1, Hp).reshape(1, Hp).astype(jnp.float32)
    bgbp = jnp.stack([_pad1(b2, Dp), _pad1(gamma, Dp), _pad1(beta, Dp)],
                     axis=0).astype(jnp.float32)           # (3, Dp)
    # TODO(synk): on mem-bound shapes (v5e) optionally stream x / emit the output
    # in bf16; on v7x optionally store weights in fp8 if accuracy budget allows.

    cost = pl.CostEstimate(
        flops=4 * M * D * H,
        transcendentals=M,
        bytes_accessed=(2 * M * D * itemsize + 2 * D * H * 2 + (H + 3 * D) * 4))

    kernel = functools.partial(ffn_kernel, eps=eps, d_real=D, d_pad=Dp,
                               inv_d=1.0 / D)

    def make_call(single_buffer_consts):
        def spec(shape, imap, invariant):
            if invariant and single_buffer_consts:
                # Grid-invariant operand: single-buffer to halve resident VMEM.
                return pl.BlockSpec(shape, imap, pipeline_mode=pl.Buffered(1))
            return pl.BlockSpec(shape, imap)

        w_invariant = (k_steps == 1)   # weights are grid-invariant only then
        return pl.pallas_call(
            kernel,
            out_shape=jax.ShapeDtypeStruct((Mp, Dp), x.dtype),
            grid_spec=pltpu.PrefetchScalarGridSpec(
                num_scalar_prefetch=0,
                grid=grid,
                in_specs=[
                    pl.BlockSpec((tm, Dp), lambda i, k: (i, 0)),       # x rows
                    spec((Dp, th), lambda i, k: (0, k), w_invariant),  # w1
                    spec((1, th), lambda i, k: (0, k), w_invariant),   # b1
                    spec((th, Dp), lambda i, k: (k, 0), w_invariant),  # w2
                    spec((3, Dp), lambda i, k: (0, 0), True),          # b2/gamma/beta
                ],
                out_specs=pl.BlockSpec((tm, Dp), lambda i, k: (i, 0)),
                scratch_shapes=[pltpu.VMEM((tm, Dp), jnp.float32)],
            ),
            compiler_params=pltpu.CompilerParams(
                dimension_semantics=("parallel", "arbitrary"),
                vmem_limit_bytes=vmem_limit),
            cost_estimate=cost,
        )

    args = (x2d, w1p, b1p, w2p, bgbp)
    try:
        out = make_call(True)(*args)
    except Exception:
        # Older runtimes may reject pl.Buffered(1); fall back to default
        # double-buffering (identical results, slightly more VMEM).
        out = make_call(False)(*args)

    return out[:M, :D].reshape(B, S, D)


def reference(x, w1, b1, w2, b2, gamma, beta, eps=1e-5):
    h = jnp.maximum(x @ w1 + b1, 0.0)
    y = h @ w2 + b2 + x
    mean = jnp.mean(y, axis=-1, keepdims=True)
    var = jnp.mean((y - mean) ** 2, axis=-1, keepdims=True)
    return (y - mean) * jax.lax.rsqrt(var + eps) * gamma + beta


if __name__ == "__main__":
    # Shapes implied by the module: x (batch, seq, dim_model), hidden FFN dim.
    B, S, D, H = 2, 8, 32, 64

    key = jax.random.PRNGKey(0)
    kx, k1, k2, k3, k4 = jax.random.split(key, 5)

    x = jax.random.normal(kx, (B, S, D), dtype=jnp.float32)

    # Deterministic synthetic parameters (fc weights stored as (in, out)).
    bound1 = 1.0 / jnp.sqrt(D)
    bound2 = 1.0 / jnp.sqrt(H)
    w1 = jax.random.uniform(k1, (D, H), jnp.float32, -bound1, bound1)
    b1 = jax.random.uniform(k2, (H,), jnp.float32, -bound1, bound1)
    w2 = jax.random.uniform(k3, (H, D), jnp.float32, -bound2, bound2)
    b2 = jax.random.uniform(k4, (D,), jnp.float32, -bound2, bound2)
    gamma = jnp.ones((D,), jnp.float32)   # LayerNorm weight init
    beta = jnp.zeros((D,), jnp.float32)   # LayerNorm bias init

    out = position_wise_feed_forward(x, w1, b1, w2, b2, gamma, beta)
    out = jax.block_until_ready(out)

    ref = reference(x, w1, b1, w2, b2, gamma, beta)
    assert out.shape == (B, S, D)
    # bf16 MXU operands (f32 accumulate) vs pure-f32 reference -> looser tolerance.
    assert jnp.allclose(out, ref, atol=5e-2, rtol=5e-2), "mismatch vs reference"

    print("KERNEL_OK")
</pallas_src>

<mosaic_0001>
module attributes {stable_mosaic.version = 11 : i64} {
  func.func @ffn_kernel(%arg0: i32, %arg1: i32, %arg2: memref<16x128xf32, #tpu.memory_space<vmem>>, %arg3: memref<128x128xbf16, #tpu.memory_space<vmem>>, %arg4: memref<1x128xf32, #tpu.memory_space<vmem>>, %arg5: memref<128x128xbf16, #tpu.memory_space<vmem>>, %arg6: memref<3x128xf32, #tpu.memory_space<vmem>>, %arg7: memref<16x128xf32, #tpu.memory_space<vmem>>, %arg8: memref<16x128xf32, #tpu.memory_space<vmem>>) attributes {dimension_semantics = [#tpu.dimension_semantics<parallel>, #tpu.dimension_semantics<arbitrary>], iteration_bounds = array<i64: 1, 1>, scalar_prefetch = 0 : i64, scratch_operands = 1 : i64, tpu.core_type = #tpu.core_type<tc>, window_params = [{transform_indices = @transform_0, window_bounds = array<i64: 16, 128>}, {pipeline_mode = #tpu.pipeline_mode<synchronous>, transform_indices = @transform_1, window_bounds = array<i64: 128, 128>}, {pipeline_mode = #tpu.pipeline_mode<synchronous>, transform_indices = @transform_2, window_bounds = array<i64: 1, 128>}, {pipeline_mode = #tpu.pipeline_mode<synchronous>, transform_indices = @transform_3, window_bounds = array<i64: 128, 128>}, {pipeline_mode = #tpu.pipeline_mode<synchronous>, transform_indices = @transform_4, window_bounds = array<i64: 3, 128>}, {transform_indices = @transform_5, window_bounds = array<i64: 16, 128>}]} {
    %c0 = arith.constant 0 : index
    %c0_0 = arith.constant 0 : index
    %0 = vector.load %arg2[%c0, %c0_0] : memref<16x128xf32, #tpu.memory_space<vmem>>, vector<16x128xf32>
    %1 = arith.truncf %0 : vector<16x128xf32> to vector<16x128xbf16>
    %c0_1 = arith.constant 0 : index
    %c0_2 = arith.constant 0 : index
    %2 = vector.load %arg3[%c0_1, %c0_2] : memref<128x128xbf16, #tpu.memory_space<vmem>>, vector<128x128xbf16>
    %cst = arith.constant dense<0.000000e+00> : vector<16x128xf32>
    %3 = tpu.matmul %1, %2, %cst {dimension_numbers = #tpu.dot_dimension_numbers<[1], [0], [0], [1], [0, 0, 1, 1], [], []>} : vector<16x128xbf16>, vector<128x128xbf16>, vector<16x128xf32> -> vector<16x128xf32>
    %c0_3 = arith.constant 0 : index
    %c0_4 = arith.constant 0 : index
    %4 = vector.load %arg4[%c0_3, %c0_4] : memref<1x128xf32, #tpu.memory_space<vmem>>, vector<1x128xf32>
    %5 = vector.broadcast %4 : vector<1x128xf32> to vector<16x128xf32>
    %6 = arith.addf %3, %5 : vector<16x128xf32>
    %cst_5 = arith.constant 0.000000e+00 : f32
    %7 = vector.broadcast %cst_5 : f32 to vector<16x128xf32>
    %8 = arith.maximumf %6, %7 : vector<16x128xf32>
    %9 = arith.truncf %8 : vector<16x128xf32> to vector<16x128xbf16>
    %c0_6 = arith.constant 0 : index
    %c0_7 = arith.constant 0 : index
    %10 = vector.load %arg5[%c0_6, %c0_7] : memref<128x128xbf16, #tpu.memory_space<vmem>>, vector<128x128xbf16>
    %cst_8 = arith.constant dense<0.000000e+00> : vector<16x128xf32>
    %11 = tpu.matmul %9, %10, %cst_8 {dimension_numbers = #tpu.dot_dimension_numbers<[1], [0], [0], [1], [0, 0, 1, 1], [], []>} : vector<16x128xbf16>, vector<128x128xbf16>, vector<16x128xf32> -> vector<16x128xf32>
    %c0_i32 = arith.constant 0 : i32
    %12 = arith.cmpi eq, %arg1, %c0_i32 : i32
    %13 = arith.extui %12 : i1 to i32
    %c0_i32_9 = arith.constant 0 : i32
    %14 = arith.cmpi ne, %13, %c0_i32_9 : i32
    scf.if %14 {
      %cst_16 = arith.constant 0.000000e+00 : f32
      %21 = vector.broadcast %cst_16 : f32 to vector<16x128xf32>
      %c0_17 = arith.constant 0 : index
      %c0_18 = arith.constant 0 : index
      %22 = vector.load %arg8[%c0_17, %c0_18] : memref<16x128xf32, #tpu.memory_space<vmem>>, vector<16x128xf32>
      tpu.vector_store %arg8[%c0_17, %c0_18], %21 {strides = array<i32>} : memref<16x128xf32, #tpu.memory_space<vmem>>, vector<16x128xf32>,
    } else {
    }
    %c0_10 = arith.constant 0 : index
    %c0_11 = arith.constant 0 : index
    %15 = vector.load %arg8[%c0_10, %c0_11] : memref<16x128xf32, #tpu.memory_space<vmem>>, vector<16x128xf32>
    %16 = arith.addf %15, %11 : vector<16x128xf32>
    %c0_12 = arith.constant 0 : index
    %c0_13 = arith.constant 0 : index
    %17 = vector.load %arg8[%c0_12, %c0_13] : memref<16x128xf32, #tpu.memory_space<vmem>>, vector<16x128xf32>
    tpu.vector_store %arg8[%c0_12, %c0_13], %16 {strides = array<i32>} : memref<16x128xf32, #tpu.memory_space<vmem>>, vector<16x128xf32>,
    %c0_i32_14 = arith.constant 0 : i32
    %18 = arith.cmpi eq, %arg1, %c0_i32_14 : i32
    %19 = arith.extui %18 : i1 to i32
    %c0_i32_15 = arith.constant 0 : i32
    %20 = arith.cmpi ne, %19, %c0_i32_15 : i32
    scf.if %20 {
      %c0_16 = arith.constant 0 : index
      %c0_17 = arith.constant 0 : index
      %21 = vector.load %arg2[%c0_16, %c0_17] : memref<16x128xf32, #tpu.memory_space<vmem>>, vector<16x128xf32>
      %c0_18 = arith.constant 0 : index
      %c0_19 = arith.constant 0 : index
      %22 = vector.load %arg6[%c0_18, %c0_19] : memref<3x128xf32, #tpu.memory_space<vmem>>, vector<1x128xf32>
      %c1 = arith.constant 1 : index
      %c0_20 = arith.constant 0 : index
      %23 = vector.load %arg6[%c1, %c0_20] : memref<3x128xf32, #tpu.memory_space<vmem>>, vector<1x128xf32>
      %c2 = arith.constant 2 : index
      %c0_21 = arith.constant 0 : index
      %24 = vector.load %arg6[%c2, %c0_21] : memref<3x128xf32, #tpu.memory_space<vmem>>, vector<1x128xf32>
      %c0_22 = arith.constant 0 : index
      %c0_23 = arith.constant 0 : index
      %25 = vector.load %arg8[%c0_22, %c0_23] : memref<16x128xf32, #tpu.memory_space<vmem>>, vector<16x128xf32>
      %26 = vector.broadcast %22 : vector<1x128xf32> to vector<16x128xf32>
      %27 = arith.addf %25, %26 : vector<16x128xf32>
      %28 = arith.addf %27, %21 : vector<16x128xf32>
      %cst_24 = arith.constant dense<0.000000e+00> : vector<16xf32>
      %29 = vector.multi_reduction <add>, %28, %cst_24 [1] : vector<16x128xf32> to vector<16xf32>
      %30 = vector.shape_cast %29 : vector<16xf32> to vector<16x1xf32>
      %cst_25 = arith.constant 3.125000e-02 : f32
      %31 = vector.broadcast %cst_25 : f32 to vector<16x1xf32>
      %32 = arith.mulf %30, %31 : vector<16x1xf32>
      %33 = vector.broadcast %32 : vector<16x1xf32> to vector<16x128xf32>
      %34 = arith.subf %28, %33 : vector<16x128xf32>
      %35 = tpu.iota {dimensions = array<i32: 1>} : vector<16x128xi32>
      %c32_i32 = arith.constant 32 : i32
      %36 = vector.broadcast %c32_i32 : i32 to vector<16x128xi32>
      %37 = arith.cmpi slt, %35, %36 : vector<16x128xi32>
      %cst_26 = arith.constant 0.000000e+00 : f32
      %38 = vector.broadcast %cst_26 : f32 to vector<16x128xf32>
      %39 = arith.select %37, %34, %38 : vector<16x128xi1>, vector<16x128xf32>
      %40 = arith.mulf %39, %39 : vector<16x128xf32>
      %cst_27 = arith.constant dense<0.000000e+00> : vector<16xf32>
      %41 = vector.multi_reduction <add>, %40, %cst_27 [1] : vector<16x128xf32> to vector<16xf32>
      %42 = vector.shape_cast %41 : vector<16xf32> to vector<16x1xf32>
      %cst_28 = arith.constant 3.125000e-02 : f32
      %43 = vector.broadcast %cst_28 : f32 to vector<16x1xf32>
      %44 = arith.mulf %42, %43 : vector<16x1xf32>
      %cst_29 = arith.constant 9.99999974E-6 : f32
      %45 = vector.broadcast %cst_29 : f32 to vector<16x1xf32>
      %46 = arith.addf %44, %45 : vector<16x1xf32>
      %47 = math.rsqrt %46 : vector<16x1xf32>
      %48 = vector.broadcast %47 : vector<16x1xf32> to vector<16x128xf32>
      %49 = arith.mulf %39, %48 : vector<16x128xf32>
      %50 = vector.broadcast %23 : vector<1x128xf32> to vector<16x128xf32>
      %51 = arith.mulf %49, %50 : vector<16x128xf32>
      %52 = vector.broadcast %24 : vector<1x128xf32> to vector<16x128xf32>
      %53 = arith.addf %51, %52 : vector<16x128xf32>
      %c0_30 = arith.constant 0 : index
      %c0_31 = arith.constant 0 : index
      %54 = vector.load %arg7[%c0_30, %c0_31] : memref<16x128xf32, #tpu.memory_space<vmem>>, vector<16x128xf32>
      tpu.vector_store %arg7[%c0_30, %c0_31], %53 {strides = array<i32>} : memref<16x128xf32, #tpu.memory_space<vmem>>, vector<16x128xf32>,
    } else {
    }
    return
  }
  func.func @transform_0(%arg0: i32, %arg1: i32) -> (i32, i32) {
    %c0_i32 = arith.constant 0 : i32
    %c0_i32_0 = arith.constant 0 : i32
    return %arg0, %c0_i32 : i32, i32
  }
  func.func @transform_1(%arg0: i32, %arg1: i32) -> (i32, i32) {
    %c0_i32 = arith.constant 0 : i32
    %c0_i32_0 = arith.constant 0 : i32
    return %c0_i32, %arg1 : i32, i32
  }
  func.func @transform_2(%arg0: i32, %arg1: i32) -> (i32, i32) {
    %c0_i32 = arith.constant 0 : i32
    %c0_i32_0 = arith.constant 0 : i32
    return %c0_i32, %arg1 : i32, i32
  }
  func.func @transform_3(%arg0: i32, %arg1: i32) -> (i32, i32) {
    %c0_i32 = arith.constant 0 : i32
    %c0_i32_0 = arith.constant 0 : i32
    return %arg1, %c0_i32 : i32, i32
  }
  func.func @transform_4(%arg0: i32, %arg1: i32) -> (i32, i32) {
    %c0_i32 = arith.constant 0 : i32
    %c0_i32_0 = arith.constant 0 : i32
    %c0_i32_1 = arith.constant 0 : i32
    return %c0_i32, %c0_i32_0 : i32, i32
  }
  func.func @transform_5(%arg0: i32, %arg1: i32) -> (i32, i32) {
    %c0_i32 = arith.constant 0 : i32
    %c0_i32_0 = arith.constant 0 : i32
    return %arg0, %c0_i32 : i32, i32
  }
}

module attributes {stable_mosaic.version = 11 : i64} {
  func.func @ffn_kernel(%arg0: i32, %arg1: i32, %arg2: memref<16x128xf32, #tpu.memory_space<vmem>>, %arg3: memref<128x128xbf16, #tpu.memory_space<vmem>>, %arg4: memref<1x128xf32, #tpu.memory_space<vmem>>, %arg5: memref<128x128xbf16, #tpu.memory_space<vmem>>, %arg6: memref<3x128xf32, #tpu.memory_space<vmem>>, %arg7: memref<16x128xf32, #tpu.memory_space<vmem>>, %arg8: memref<16x128xf32, #tpu.memory_space<vmem>>) attributes {dimension_semantics = [#tpu.dimension_semantics<parallel>, #tpu.dimension_semantics<arbitrary>], iteration_bounds = array<i64: 1, 1>, scalar_prefetch = 0 : i64, scratch_operands = 1 : i64, tpu.core_type = #tpu.core_type<tc>, window_params = [{transform_indices = @transform_0, window_bounds = array<i64: 16, 128>}, {transform_indices = @transform_1, window_bounds = array<i64: 128, 128>}, {transform_indices = @transform_2, window_bounds = array<i64: 1, 128>}, {transform_indices = @transform_3, window_bounds = array<i64: 128, 128>}, {pipeline_mode = #tpu.pipeline_mode<synchronous>, transform_indices = @transform_4, window_bounds = array<i64: 3, 128>}, {transform_indices = @transform_5, window_bounds = array<i64: 16, 128>}]} {
    %c0 = arith.constant 0 : index
    %c0_0 = arith.constant 0 : index
    %0 = vector.load %arg2[%c0, %c0_0] : memref<16x128xf32, #tpu.memory_space<vmem>>, vector<16x128xf32>
    %1 = arith.truncf %0 : vector<16x128xf32> to vector<16x128xbf16>
    %c0_1 = arith.constant 0 : index
    %c0_2 = arith.constant 0 : index
    %2 = vector.load %arg3[%c0_1, %c0_2] : memref<128x128xbf16, #tpu.memory_space<vmem>>, vector<128x128xbf16>
    %cst = arith.constant dense<0.000000e+00> : vector<16x128xf32>
    %3 = tpu.matmul %1, %2, %cst {dimension_numbers = #tpu.dot_dimension_numbers<[1], [0], [0], [1], [0, 0, 1, 1], [], []>} : vector<16x128xbf16>, vector<128x128xbf16>, vector<16x128xf32> -> vector<16x128xf32>
    %c0_3 = arith.constant 0 : index
    %c0_4 = arith.constant 0 : index
    %4 = vector.load %arg4[%c0_3, %c0_4] : memref<1x128xf32, #tpu.memory_space<vmem>>, vector<1x128xf32>
    %5 = vector.broadcast %4 : vector<1x128xf32> to vector<16x128xf32>
    %6 = arith.addf %3, %5 : vector<16x128xf32>
    %cst_5 = arith.constant 0.000000e+00 : f32
    %7 = vector.broadcast %cst_5 : f32 to vector<16x128xf32>
    %8 = arith.maximumf %6, %7 : vector<16x128xf32>
    %9 = arith.truncf %8 : vector<16x128xf32> to vector<16x128xbf16>
    %c0_6 = arith.constant 0 : index
    %c0_7 = arith.constant 0 : index
    %10 = vector.load %arg5[%c0_6, %c0_7] : memref<128x128xbf16, #tpu.memory_space<vmem>>, vector<128x128xbf16>
    %cst_8 = arith.constant dense<0.000000e+00> : vector<16x128xf32>
    %11 = tpu.matmul %9, %10, %cst_8 {dimension_numbers = #tpu.dot_dimension_numbers<[1], [0], [0], [1], [0, 0, 1, 1], [], []>} : vector<16x128xbf16>, vector<128x128xbf16>, vector<16x128xf32> -> vector<16x128xf32>
    %c0_i32 = arith.constant 0 : i32
    %12 = arith.cmpi eq, %arg1, %c0_i32 : i32
    %13 = arith.extui %12 : i1 to i32
    %c0_i32_9 = arith.constant 0 : i32
    %14 = arith.cmpi ne, %13, %c0_i32_9 : i32
    scf.if %14 {
      %cst_16 = arith.constant 0.000000e+00 : f32
      %21 = vector.broadcast %cst_16 : f32 to vector<16x128xf32>
      %c0_17 = arith.constant 0 : index
      %c0_18 = arith.constant 0 : index
      %22 = vector.load %arg8[%c0_17, %c0_18] : memref<16x128xf32, #tpu.memory_space<vmem>>, vector<16x128xf32>
      tpu.vector_store %arg8[%c0_17, %c0_18], %21 {strides = array<i32>} : memref<16x128xf32, #tpu.memory_space<vmem>>, vector<16x128xf32>,
    } else {
    }
    %c0_10 = arith.constant 0 : index
    %c0_11 = arith.constant 0 : index
    %15 = vector.load %arg8[%c0_10, %c0_11] : memref<16x128xf32, #tpu.memory_space<vmem>>, vector<16x128xf32>
    %16 = arith.addf %15, %11 : vector<16x128xf32>
    %c0_12 = arith.constant 0 : index
    %c0_13 = arith.constant 0 : index
    %17 = vector.load %arg8[%c0_12, %c0_13] : memref<16x128xf32, #tpu.memory_space<vmem>>, vector<16x128xf32>
    tpu.vector_store %arg8[%c0_12, %c0_13], %16 {strides = array<i32>} : memref<16x128xf32, #tpu.memory_space<vmem>>, vector<16x128xf32>,
    %c0_i32_14 = arith.constant 0 : i32
    %18 = arith.cmpi eq, %arg1, %c0_i32_14 : i32
    %19 = arith.extui %18 : i1 to i32
    %c0_i32_15 = arith.constant 0 : i32
    %20 = arith.cmpi ne, %19, %c0_i32_15 : i32
    scf.if %20 {
      %c0_16 = arith.constant 0 : index
      %c0_17 = arith.constant 0 : index
      %21 = vector.load %arg2[%c0_16, %c0_17] : memref<16x128xf32, #tpu.memory_space<vmem>>, vector<16x128xf32>
      %c0_18 = arith.constant 0 : index
      %c0_19 = arith.constant 0 : index
      %22 = vector.load %arg6[%c0_18, %c0_19] : memref<3x128xf32, #tpu.memory_space<vmem>>, vector<1x128xf32>
      %c1 = arith.constant 1 : index
      %c0_20 = arith.constant 0 : index
      %23 = vector.load %arg6[%c1, %c0_20] : memref<3x128xf32, #tpu.memory_space<vmem>>, vector<1x128xf32>
      %c2 = arith.constant 2 : index
      %c0_21 = arith.constant 0 : index
      %24 = vector.load %arg6[%c2, %c0_21] : memref<3x128xf32, #tpu.memory_space<vmem>>, vector<1x128xf32>
      %c0_22 = arith.constant 0 : index
      %c0_23 = arith.constant 0 : index
      %25 = vector.load %arg8[%c0_22, %c0_23] : memref<16x128xf32, #tpu.memory_space<vmem>>, vector<16x128xf32>
      %26 = vector.broadcast %22 : vector<1x128xf32> to vector<16x128xf32>
      %27 = arith.addf %25, %26 : vector<16x128xf32>
      %28 = arith.addf %27, %21 : vector<16x128xf32>
      %cst_24 = arith.constant dense<0.000000e+00> : vector<16xf32>
      %29 = vector.multi_reduction <add>, %28, %cst_24 [1] : vector<16x128xf32> to vector<16xf32>
      %30 = vector.shape_cast %29 : vector<16xf32> to vector<16x1xf32>
      %cst_25 = arith.constant 3.125000e-02 : f32
      %31 = vector.broadcast %cst_25 : f32 to vector<16x1xf32>
      %32 = arith.mulf %30, %31 : vector<16x1xf32>
      %33 = vector.broadcast %32 : vector<16x1xf32> to vector<16x128xf32>
      %34 = arith.subf %28, %33 : vector<16x128xf32>
      %35 = tpu.iota {dimensions = array<i32: 1>} : vector<16x128xi32>
      %c32_i32 = arith.constant 32 : i32
      %36 = vector.broadcast %c32_i32 : i32 to vector<16x128xi32>
      %37 = arith.cmpi slt, %35, %36 : vector<16x128xi32>
      %cst_26 = arith.constant 0.000000e+00 : f32
      %38 = vector.broadcast %cst_26 : f32 to vector<16x128xf32>
      %39 = arith.select %37, %34, %38 : vector<16x128xi1>, vector<16x128xf32>
      %40 = arith.mulf %39, %39 : vector<16x128xf32>
      %cst_27 = arith.constant dense<0.000000e+00> : vector<16xf32>
      %41 = vector.multi_reduction <add>, %40, %cst_27 [1] : vector<16x128xf32> to vector<16xf32>
      %42 = vector.shape_cast %41 : vector<16xf32> to vector<16x1xf32>
      %cst_28 = arith.constant 3.125000e-02 : f32
      %43 = vector.broadcast %cst_28 : f32 to vector<16x1xf32>
      %44 = arith.mulf %42, %43 : vector<16x1xf32>
      %cst_29 = arith.constant 9.99999974E-6 : f32
      %45 = vector.broadcast %cst_29 : f32 to vector<16x1xf32>
      %46 = arith.addf %44, %45 : vector<16x1xf32>
      %47 = math.rsqrt %46 : vector<16x1xf32>
      %48 = vector.broadcast %47 : vector<16x1xf32> to vector<16x128xf32>
      %49 = arith.mulf %39, %48 : vector<16x128xf32>
      %50 = vector.broadcast %23 : vector<1x128xf32> to vector<16x128xf32>
      %51 = arith.mulf %49, %50 : vector<16x128xf32>
      %52 = vector.broadcast %24 : vector<1x128xf32> to vector<16x128xf32>
      %53 = arith.addf %51, %52 : vector<16x128xf32>
      %c0_30 = arith.constant 0 : index
      %c0_31 = arith.constant 0 : index
      %54 = vector.load %arg7[%c0_30, %c0_31] : memref<16x128xf32, #tpu.memory_space<vmem>>, vector<16x128xf32>
      tpu.vector_store %arg7[%c0_30, %c0_31], %53 {strides = array<i32>} : memref<16x128xf32, #tpu.memory_space<vmem>>, vector<16x128xf32>,
    } else {
    }
    return
  }
  func.func @transform_0(%arg0: i32, %arg1: i32) -> (i32, i32) {
    %c0_i32 = arith.constant 0 : i32
    %c0_i32_0 = arith.constant 0 : i32
    return %arg0, %c0_i32 : i32, i32
  }
  func.func @transform_1(%arg0: i32, %arg1: i32) -> (i32, i32) {
    %c0_i32 = arith.constant 0 : i32
    %c0_i32_0 = arith.constant 0 : i32
    return %c0_i32, %arg1 : i32, i32
  }
  func.func @transform_2(%arg0: i32, %arg1: i32) -> (i32, i32) {
    %c0_i32 = arith.constant 0 : i32
    %c0_i32_0 = arith.constant 0 : i32
    return %c0_i32, %arg1 : i32, i32
  }
  func.func @transform_3(%arg0: i32, %arg1: i32) -> (i32, i32) {
    %c0_i32 = arith.constant 0 : i32
    %c0_i32_0 = arith.constant 0 : i32
    return %arg1, %c0_i32 : i32, i32
  }
  func.func @transform_4(%arg0: i32, %arg1: i32) -> (i32, i32) {
    %c0_i32 = arith.constant 0 : i32
    %c0_i32_0 = arith.constant 0 : i32
    %c0_i32_1 = arith.constant 0 : i32
    return %c0_i32, %c0_i32_0 : i32, i32
  }
  func.func @transform_5(%arg0: i32, %arg1: i32) -> (i32, i32) {
    %c0_i32 = arith.constant 0 : i32
    %c0_i32_0 = arith.constant 0 : i32
    return %arg0, %c0_i32 : i32, i32
  }
}

</mosaic_0001>

<llo_original>
// kernel: tpu_custom_call.1
$region0: #{tpu_custom_call.1}
  #allocation0 [shape = 'u32[]', space=smem, size = 0x4, offset = 0x4, fixed_abs, tag = 'smem constant byte address 0x4 - core index']
  #allocation1 [shape = 'u32[144,128]{1,0:T(1,128)}', space=vmem, size = 0x12000, scoped, tag = 'internal scratch']
  #allocation2 [shape = 'f32[16,128]{1,0:T(8,128)}', space=vmem, size = 0x2000, scoped, tag = 'scratch operand']
  %s0 = inlined_call_operand.hbm [shape: f32[16,128], index: 0, kind: input, shape index: {}]
  %s1 = inlined_call_operand.hbm [shape: bf16[128,128], index: 1, kind: input, shape index: {}]
  %s2 = inlined_call_operand.vmem [shape: f32[1,128], index: 2, kind: input, shape index: {}]
  %s3 = inlined_call_operand.hbm [shape: bf16[128,128], index: 3, kind: input, shape index: {}]
  %s4 = inlined_call_operand.vmem [shape: f32[3,128], index: 4, kind: input, shape index: {}]
  %s5 = inlined_call_operand.hbm [shape: f32[16,128], index: 5, kind: output, shape index: {}]
  %s6 = sld [smem:[#allocation0]]
  $region50: #{tpu_custom_call.1} parent=0
    _
  %s8 = ssub.s32 1, %s6
  %s9 = scalar_select 0, %s8, %s6
  $region1: #{tpu_custom_call.1} parent=0
    #allocation3 [shape = 'u8[8192]{0}', space=vmem, size = 0x2000, scoped, tag = 'input window, operand 0, single buffered']
    #allocation4 [shape = 's32[1]{0}', space=sflag, size = 0x4, scoped, tag = 'scoped memory for tpu_custom_call.1']
    #allocation5 [shape = 's32[1]{0}', space=sflag, size = 0x4, scoped, tag = 'scoped memory for tpu_custom_call.1']
    #allocation6 [shape = 'u8[32768]{0}', space=vmem, size = 0x8000, scoped, tag = 'input window, operand 1, single buffered']
    #allocation7 [shape = 's32[1]{0}', space=sflag, size = 0x4, scoped, tag = 'scoped memory for tpu_custom_call.1']
    #allocation8 [shape = 'u8[32768]{0}', space=vmem, size = 0x8000, scoped, tag = 'input window, operand 3, single buffered']
    #allocation9 [shape = 'u8[8192]{0}', space=vmem, size = 0x2000, scoped, tag = 'output window, operand 0, single buffered']
    %10 = vsyncpa [#allocation4], 0
    %11 = vsyncpa [#allocation7], 0
    %12 = vsyncpa [#allocation5], 0
    // Predicated region
    $region2: #{tpu_custom_call.1} parent=1 // pred_check
      _
    $region3: #{tpu_custom_call.1} parent=1 // pred_check_branch
      %14 = sbr.rel (0) target = $region5
    $region4: #{tpu_custom_call.1} parent=1 // pred_region
      %s16 = ssub.s32 256, 256
      %17 = vsyncadd [#allocation4], %s16
      %s18 = sshll.u32 [#allocation3], 4
      %s19 = int_to_ptr.vmem [resolvable:$true] %s18
      %24 = dma.hbm_to_vmem [thread:$0]  %s0, 256, %s19, [#allocation4], 128, 128, 8
    $region5: #{tpu_custom_call.1} parent=1 // pred_fallthru
      _
    // Predicated region
    $region6: #{tpu_custom_call.1} parent=1 // pred_check
      _
    $region7: #{tpu_custom_call.1} parent=1 // pred_check_branch
      %26 = sbr.rel (0) target = $region9
    $region8: #{tpu_custom_call.1} parent=1 // pred_region
      %s28 = ssub.s32 1024, 1024
      %29 = vsyncadd [#allocation7], %s28
      %s30 = sshll.u32 [#allocation6], 4
      %s31 = int_to_ptr.vmem [resolvable:$true] %s30
      %36 = dma.hbm_to_vmem [thread:$0]  %s1, 1024, %s31, [#allocation7], 64, 64, 4
    $region9: #{tpu_custom_call.1} parent=1 // pred_fallthru
      _
    // Predicated region
    $region10: #{tpu_custom_call.1} parent=1 // pred_check
      _
    $region11: #{tpu_custom_call.1} parent=1 // pred_check_branch
      %38 = sbr.rel (0) target = $region13
    $region12: #{tpu_custom_call.1} parent=1 // pred_region
      _
    $region13: #{tpu_custom_call.1} parent=1 // pred_fallthru
      _
    // Predicated region
    $region14: #{tpu_custom_call.1} parent=1 // pred_check
      _
    $region15: #{tpu_custom_call.1} parent=1 // pred_check_branch
      %40 = sbr.rel (0) target = $region17
    $region16: #{tpu_custom_call.1} parent=1 // pred_region
      %s42 = ssub.s32 1024, 1024
      %43 = vsyncadd [#allocation7], %s42
      %s44 = sshll.u32 [#allocation8], 4
      %s45 = int_to_ptr.vmem [resolvable:$true] %s44
      %50 = dma.hbm_to_vmem [thread:$0]  %s3, 1024, %s45, [#allocation7], 64, 64, 4
    $region17: #{tpu_custom_call.1} parent=1 // pred_fallthru
      _
    // Predicated region
    $region18: #{tpu_custom_call.1} parent=1 // pred_check
      _
    $region19: #{tpu_custom_call.1} parent=1 // pred_check_branch
      %52 = sbr.rel (0) target = $region21
    $region20: #{tpu_custom_call.1} parent=1 // pred_region
      _
    $region21: #{tpu_custom_call.1} parent=1 // pred_fallthru
      _
    // Predicated region
    $region22: #{tpu_custom_call.1} parent=1 // pred_check
      _
    $region23: #{tpu_custom_call.1} parent=1 // pred_check_branch
      %54 = sbr.rel (0) target = $region25
    $region24: #{tpu_custom_call.1} parent=1 // pred_region
      %55 = dma.done [#allocation4], 256
    $region25: #{tpu_custom_call.1} parent=1 // pred_fallthru
      _
    // Predicated region
    $region26: #{tpu_custom_call.1} parent=1 // pred_check
      _
    $region27: #{tpu_custom_call.1} parent=1 // pred_check_branch
      %57 = sbr.rel (0) target = $region29
    $region28: #{tpu_custom_call.1} parent=1 // pred_region
      %58 = dma.done [#allocation7], 1024
    $region29: #{tpu_custom_call.1} parent=1 // pred_fallthru
      _
    // Predicated region
    $region30: #{tpu_custom_call.1} parent=1 // pred_check
      _
    $region31: #{tpu_custom_call.1} parent=1 // pred_check_branch
      %60 = sbr.rel (0) target = $region33
    $region32: #{tpu_custom_call.1} parent=1 // pred_region
      %61 = dma.done [#allocation7], 1024
    $region33: #{tpu_custom_call.1} parent=1 // pred_fallthru
      _
    %v63 = vld [vmem:[#allocation3] sm:$0xff]
    %v64 = vld [vmem:[#allocation3 + $0x8] sm:$0xff]
    %v65 = vpack.c.bf16 %v64, %v63
    %v66 = vld [vmem:[#allocation6] sm:$0xf]
    %v67 = vld [vmem:[#allocation6 + $0x4] sm:$0xf]
    %v68 = vld [vmem:[#allocation6 + $0x8] sm:$0xf]
    %v69 = vld [vmem:[#allocation6 + $0xc] sm:$0xf]
    %v70 = vld [vmem:[#allocation6 + $0x10] sm:$0xf]
    %v71 = vld [vmem:[#allocation6 + $0x14] sm:$0xf]
    %v72 = vld [vmem:[#allocation6 + $0x18] sm:$0xf]
    %v73 = vld [vmem:[#allocation6 + $0x1c] sm:$0xf]
    %v74 = vld [vmem:[#allocation6 + $0x20] sm:$0xf]
    %v75 = vld [vmem:[#allocation6 + $0x24] sm:$0xf]
    %v76 = vld [vmem:[#allocation6 + $0x28] sm:$0xf]
    %v77 = vld [vmem:[#allocation6 + $0x2c] sm:$0xf]
    %v78 = vld [vmem:[#allocation6 + $0x30] sm:$0xf]
    %v79 = vld [vmem:[#allocation6 + $0x34] sm:$0xf]
    %v80 = vld [vmem:[#allocation6 + $0x38] sm:$0xf]
    %v81 = vld [vmem:[#allocation6 + $0x3c] sm:$0xf]
    %v82 = vld [vmem:[%s2] sm:$0x1]
    %v84 = vlaneseq
    %v85 = vshrl.u32 %v84, 7
    %v86 = vsub.s32 0, %v85
    %v87 = vrot.slane %v82, %v86
    %v105 = vunpack.c.l.b16 %v66
    %v106 = vunpack.c.l.b16 %v67
    %v107 = vunpack.c.l.b16 %v68
    %v108 = vunpack.c.l.b16 %v69
    %v109 = vunpack.c.l.b16 %v70
    %v110 = vunpack.c.l.b16 %v71
    %v111 = vunpack.c.l.b16 %v72
    %v112 = vunpack.c.l.b16 %v73
    %v113 = vunpack.c.l.b16 %v74
    %v114 = vunpack.c.l.b16 %v75
    %v115 = vunpack.c.l.b16 %v76
    %v116 = vunpack.c.l.b16 %v77
    %v117 = vunpack.c.l.b16 %v78
    %v118 = vunpack.c.l.b16 %v79
    %v119 = vunpack.c.l.b16 %v80
    %v120 = vunpack.c.l.b16 %v81
    %v121 = vpack.c.b16 %v106, %v105
    %v122 = vpack.c.b16 %v108, %v107
    %v123 = vpack.c.b16 %v110, %v109
    %v124 = vpack.c.b16 %v112, %v111
    %v125 = vpack.c.b16 %v114, %v113
    %v126 = vpack.c.b16 %v116, %v115
    %v127 = vpack.c.b16 %v118, %v117
    %v128 = vpack.c.b16 %v120, %v119
    %137 = vmatprep.subr.bf16.mxu0 0
    %138 = vmatpush1.bf16.msra.mxu0 %v128
    %139 = vmatprep.subr.bf16.mxu0 0
    %140 = vmatpush1.bf16.msra.mxu0 %v127
    %141 = vmatprep.subr.bf16.mxu0 0
    %142 = vmatpush1.bf16.msra.mxu0 %v126
    %143 = vmatprep.subr.bf16.mxu0 0
    %144 = vmatpush1.bf16.msra.mxu0 %v125
    %145 = vmatprep.subr.bf16.mxu0 0
    %146 = vmatpush1.bf16.msra.mxu0 %v124
    %147 = vmatprep.subr.bf16.mxu0 0
    %148 = vmatpush1.bf16.msra.mxu0 %v123
    %149 = vmatprep.subr.bf16.mxu0 0
    %150 = vmatpush1.bf16.msra.mxu0 %v122
    %151 = vmatprep.subr.bf16.mxu0 0
    %152 = vmatpush1.bf16.msra.mxu0 %v121
    %153 = vmatprep.subr.bf16.mxu0 0
    %154 = vmatpush2.bf16.msra.mxu0 0
    %155 = vmatprep.subr.bf16.mxu0 0
    %156 = vmatpush2.bf16.msra.mxu0 0
    %157 = vmatprep.subr.bf16.mxu0 0
    %158 = vmatpush2.bf16.msra.mxu0 0
    %159 = vmatprep.subr.bf16.mxu0 0
    %160 = vmatpush2.bf16.msra.mxu0 0
    %161 = vmatprep.subr.bf16.mxu0 0
    %162 = vmatpush2.bf16.msra.mxu0 0
    %163 = vmatprep.subr.bf16.mxu0 0
    %164 = vmatpush2.bf16.msra.mxu0 0
    %165 = vmatprep.subr.bf16.mxu0 0
    %166 = vmatpush2.bf16.msra.mxu0 0
    %167 = vmatprep.subr.bf16.mxu0 0
    %168 = vmatpush2.bf16.msra.mxu0 0
    %169 = vmatprep.mubr.bf16.mxu0 0
    %170 = vmatmul.mubr.bf16.gmra.mxu0 %v65
    %v171 = vpop.f32.mrf.mxu0
    %v172 = vadd.f32 %v87, %v171
    %v173 = vpop.f32.mrf.mxu0
    %v174 = vpop.f32.mrf.mxu0
    %v175 = vadd.f32 %v87, %v174
    %v176 = vpop.f32.mrf.mxu0
    %177 = vdwg.mxu0
    %v178 = vmax.f32 %v172, 0.0
    %v179 = vmax.f32 %v175, 0.0
    %v180 = vpack.c.bf16 %v179, %v178
    %v181 = vld [vmem:[#allocation8] sm:$0xf]
    %v182 = vld [vmem:[#allocation8 + $0x4] sm:$0xf]
    %v183 = vld [vmem:[#allocation8 + $0x8] sm:$0xf]
    %v184 = vld [vmem:[#allocation8 + $0xc] sm:$0xf]
    %v185 = vld [vmem:[#allocation8 + $0x10] sm:$0xf]
    %v186 = vld [vmem:[#allocation8 + $0x14] sm:$0xf]
    %v187 = vld [vmem:[#allocation8 + $0x18] sm:$0xf]
    %v188 = vld [vmem:[#allocation8 + $0x1c] sm:$0xf]
    %v189 = vld [vmem:[#allocation8 + $0x20] sm:$0xf]
    %v190 = vld [vmem:[#allocation8 + $0x24] sm:$0xf]
    %v191 = vld [vmem:[#allocation8 + $0x28] sm:$0xf]
    %v192 = vld [vmem:[#allocation8 + $0x2c] sm:$0xf]
    %v193 = vld [vmem:[#allocation8 + $0x30] sm:$0xf]
    %v194 = vld [vmem:[#allocation8 + $0x34] sm:$0xf]
    %v195 = vld [vmem:[#allocation8 + $0x38] sm:$0xf]
    %v196 = vld [vmem:[#allocation8 + $0x3c] sm:$0xf]
    %v213 = vunpack.c.l.b16 %v181
    %v214 = vunpack.c.l.b16 %v182
    %v215 = vunpack.c.l.b16 %v183
    %v216 = vunpack.c.l.b16 %v184
    %v217 = vunpack.c.l.b16 %v185
    %v218 = vunpack.c.l.b16 %v186
    %v219 = vunpack.c.l.b16 %v187
    %v220 = vunpack.c.l.b16 %v188
    %v221 = vunpack.c.l.b16 %v189
    %v222 = vunpack.c.l.b16 %v190
    %v223 = vunpack.c.l.b16 %v191
    %v224 = vunpack.c.l.b16 %v192
    %v225 = vunpack.c.l.b16 %v193
    %v226 = vunpack.c.l.b16 %v194
    %v227 = vunpack.c.l.b16 %v195
    %v228 = vunpack.c.l.b16 %v196
    %v229 = vpack.c.b16 %v214, %v213
    %v230 = vpack.c.b16 %v216, %v215
    %v231 = vpack.c.b16 %v218, %v217
    %v232 = vpack.c.b16 %v220, %v219
    %v233 = vpack.c.b16 %v222, %v221
    %v234 = vpack.c.b16 %v224, %v223
    %v235 = vpack.c.b16 %v226, %v225
    %v236 = vpack.c.b16 %v228, %v227
    %245 = vmatprep.subr.bf16.mxu0 0
    %246 = vmatpush1.bf16.msra.mxu0 %v236
    %247 = vmatprep.subr.bf16.mxu0 0
    %248 = vmatpush1.bf16.msra.mxu0 %v235
    %249 = vmatprep.subr.bf16.mxu0 0
    %250 = vmatpush1.bf16.msra.mxu0 %v234
    %251 = vmatprep.subr.bf16.mxu0 0
    %252 = vmatpush1.bf16.msra.mxu0 %v233
    %253 = vmatprep.subr.bf16.mxu0 0
    %254 = vmatpush1.bf16.msra.mxu0 %v232
    %255 = vmatprep.subr.bf16.mxu0 0
    %256 = vmatpush1.bf16.msra.mxu0 %v231
    %257 = vmatprep.subr.bf16.mxu0 0
    %258 = vmatpush1.bf16.msra.mxu0 %v230
    %259 = vmatprep.subr.bf16.mxu0 0
    %260 = vmatpush1.bf16.msra.mxu0 %v229
    %261 = vmatprep.subr.bf16.mxu0 0
    %262 = vmatpush2.bf16.msra.mxu0 0
    %263 = vmatprep.subr.bf16.mxu0 0
    %264 = vmatpush2.bf16.msra.mxu0 0
    %265 = vmatprep.subr.bf16.mxu0 0
    %266 = vmatpush2.bf16.msra.mxu0 0
    %267 = vmatprep.subr.bf16.mxu0 0
    %268 = vmatpush2.bf16.msra.mxu0 0
    %269 = vmatprep.subr.bf16.mxu0 0
    %270 = vmatpush2.bf16.msra.mxu0 0
    %271 = vmatprep.subr.bf16.mxu0 0
    %272 = vmatpush2.bf16.msra.mxu0 0
    %273 = vmatprep.subr.bf16.mxu0 0
    %274 = vmatpush2.bf16.msra.mxu0 0
    %275 = vmatprep.subr.bf16.mxu0 0
    %276 = vmatpush2.bf16.msra.mxu0 0
    %277 = vmatprep.mubr.bf16.mxu0 0
    %278 = vmatmul.mubr.bf16.gmra.mxu0 %v180
    %v279 = vpop.f32.mrf.mxu0
    %v280 = vadd.f32 0.0, %v279
    %v281 = vpop.f32.mrf.mxu0
    %v282 = vpop.f32.mrf.mxu0
    %v283 = vadd.f32 0.0, %v282
    %v284 = vpop.f32.mrf.mxu0
    %285 = vdwg.mxu0
    %p286 = scmp.eq.s32.totalorder 0, 0
    // Predicated region
    $region34: #{tpu_custom_call.1} parent=1 // pred_check
      %p287 = pneg %p286
    $region35: #{tpu_custom_call.1} parent=1 // pred_check_branch
      %289 = sbr.rel (%p287) target = $region37
    $region36: #{tpu_custom_call.1} parent=1 // pred_region
      %290 = vst [vmem:[#allocation2] sm:$0xff] 0.0
      %291 = vst [vmem:[#allocation2 + $0x8] sm:$0xff] 0.0
    $region37: #{tpu_custom_call.1} parent=1 // pred_fallthru
      _
    %v292 = vld [vmem:[#allocation2] sm:$0xff]
    %v293 = vld [vmem:[#allocation2 + $0x8] sm:$0xff]
    %v294 = vadd.f32 %v292, %v280
    %v295 = vadd.f32 %v293, %v283
    %296 = vst [vmem:[#allocation2] sm:$0xff] %v294
    %297 = vst [vmem:[#allocation2 + $0x8] sm:$0xff] %v295
    // Predicated region
    $region38: #{tpu_custom_call.1} parent=1 // pred_check
      %p298 = pneg %p286
    $region39: #{tpu_custom_call.1} parent=1 // pred_check_branch
      %300 = sbr.rel (%p298) target = $region41
    $region40: #{tpu_custom_call.1} parent=1 // pred_region
      %v301 = vld [vmem:[#allocation3] sm:$0xff]
      %v302 = vld [vmem:[#allocation3 + $0x8] sm:$0xff]
      %v303 = vld [vmem:[%s4] sm:$0x1]
      %v304 = vld [vmem:[%s4 + $0x1] sm:$0x1]
      %v305 = vld [vmem:[%s4 + $0x2] sm:$0x1]
      %v306 = vld [vmem:[#allocation2] sm:$0xff]
      %v307 = vld [vmem:[#allocation2 + $0x8] sm:$0xff]
      %v308 = vlaneseq
      %v309 = vshrl.u32 %v308, 7
      %v310 = vsub.s32 0, %v309
      %v311 = vrot.slane %v303, %v310
      %v312 = vadd.f32 %v306, %v311
      %v313 = vadd.f32 %v307, %v311
      %v314 = vadd.f32 %v312, %v301
      %v315 = vadd.f32 %v313, %v302
      %316 = vadd.xlane.f32.xlu0 %v314
      %v317 = vpop.xlane.xlu0 %316
      %318 = vadd.xlane.f32.xlu0 %v315
      %v319 = vpop.xlane.xlu0 %318
      %v320 = vmul.f32 %v317, 0.03125
      %v321 = vmul.f32 %v319, 0.03125
      %v322 = vsub.f32 %v314, %v320
      %v323 = vsub.f32 %v315, %v321
      %v324 = vlaneseq
      %v325 = vand.u32 %v324, 127
      %vm326 = vcmp.lt.s32.totalorder %v325, 32
      %v327 = vsel %vm326, %v322, 0.0
      %v328 = vsel %vm326, %v323, 0.0
      %v329 = vmul.f32 %v327, %v327
      %v330 = vmul.f32 %v328, %v328
      %331 = vadd.xlane.f32.xlu0 %v329
      %v332 = vpop.xlane.xlu0 %331
      %333 = vadd.xlane.f32.xlu0 %v330
      %v334 = vpop.xlane.xlu0 %333
      %v335 = vmul.f32 %v332, 0.03125
      %v336 = vmul.f32 %v334, 0.03125
      %v337 = vadd.f32 %v335, 1e-05
      %v338 = vadd.f32 %v336, 1e-05
      %v339 = vrsqrt.pop %v337
      %v340 = vrsqrt.pop %v338
      %v341 = vmul.f32 %v327, %v339
      %v342 = vmul.f32 %v328, %v340
      %v343 = vlaneseq
      %v344 = vshrl.u32 %v343, 7
      %v345 = vsub.s32 0, %v344
      %v346 = vrot.slane %v304, %v345
      %v347 = vmul.f32 %v341, %v346
      %v348 = vmul.f32 %v342, %v346
      %v349 = vlaneseq
      %v350 = vshrl.u32 %v349, 7
      %v351 = vsub.s32 0, %v350
      %v352 = vrot.slane %v305, %v351
      %v353 = vadd.f32 %v347, %v352
      %v354 = vadd.f32 %v348, %v352
      %355 = vst [vmem:[#allocation9] sm:$0xff] %v353
      %356 = vst [vmem:[#allocation9 + $0x8] sm:$0xff] %v354
    $region41: #{tpu_custom_call.1} parent=1 // pred_fallthru
      _
    // Predicated region
    $region42: #{tpu_custom_call.1} parent=1 // pred_check
      _
    $region43: #{tpu_custom_call.1} parent=1 // pred_check_branch
      %358 = sbr.rel (0) target = $region45
    $region44: #{tpu_custom_call.1} parent=1 // pred_region
      %s360 = ssub.s32 256, 256
      %361 = vsyncadd [#allocation5], %s360
      %s362 = sshll.u32 [#allocation9], 4
      %s363 = int_to_ptr.vmem [resolvable:$true] %s362
      %368 = dma.vmem_to_hbm [thread:$0]  %s363, 256, %s5, [#allocation5], 128, 128, 8
    $region45: #{tpu_custom_call.1} parent=1 // pred_fallthru
      _
    // Predicated region
    $region46: #{tpu_custom_call.1} parent=1 // pred_check
      _
    $region47: #{tpu_custom_call.1} parent=1 // pred_check_branch
      %370 = sbr.rel (0) target = $region49
    $region48: #{tpu_custom_call.1} parent=1 // pred_region
      %371 = dma.done [#allocation5], 256
    $region49: #{tpu_custom_call.1} parent=1 // pred_fallthru
      _
    %372 = vsyncpa [#allocation4], 1
    %373 = vsyncpa [#allocation7], 1
    %374 = vsyncpa [#allocation5], 1

// kernel: tpu_custom_call.1
$region0: #{tpu_custom_call.1}
  #allocation0 [shape = 'u32[]', space=smem, size = 0x4, offset = 0x4, fixed_abs, tag = 'smem constant byte address 0x4 - core index']
  #allocation1 [shape = 'u32[144,128]{1,0:T(1,128)}', space=vmem, size = 0x12000, scoped, tag = 'internal scratch']
  #allocation2 [shape = 'f32[16,128]{1,0:T(8,128)}', space=vmem, size = 0x2000, scoped, tag = 'scratch operand']
  %s0 = inlined_call_operand.hbm [shape: f32[16,128], index: 0, kind: input, shape index: {}]
  %s1 = inlined_call_operand.hbm [shape: bf16[128,128], index: 1, kind: input, shape index: {}]
  %s2 = inlined_call_operand.vmem [shape: f32[1,128], index: 2, kind: input, shape index: {}]
  %s3 = inlined_call_operand.hbm [shape: bf16[128,128], index: 3, kind: input, shape index: {}]
  %s4 = inlined_call_operand.vmem [shape: f32[3,128], index: 4, kind: input, shape index: {}]
  %s5 = inlined_call_operand.hbm [shape: f32[16,128], index: 5, kind: output, shape index: {}]
  %s6 = sld [smem:[#allocation0]]
  $region50: #{tpu_custom_call.1} parent=0
    _
  %s8 = ssub.s32 1, %s6
  %s9 = scalar_select 0, %s8, %s6
  $region1: #{tpu_custom_call.1} parent=0
    #allocation3 [shape = 'u8[8192]{0}', space=vmem, size = 0x2000, scoped, tag = 'input window, operand 0, single buffered']
    #allocation4 [shape = 's32[1]{0}', space=sflag, size = 0x4, scoped, tag = 'scoped memory for tpu_custom_call.1']
    #allocation5 [shape = 's32[1]{0}', space=sflag, size = 0x4, scoped, tag = 'scoped memory for tpu_custom_call.1']
    #allocation6 [shape = 'u8[32768]{0}', space=vmem, size = 0x8000, scoped, tag = 'input window, operand 1, single buffered']
    #allocation7 [shape = 's32[1]{0}', space=sflag, size = 0x4, scoped, tag = 'scoped memory for tpu_custom_call.1']
    #allocation8 [shape = 'u8[32768]{0}', space=vmem, size = 0x8000, scoped, tag = 'input window, operand 3, single buffered']
    #allocation9 [shape = 'u8[8192]{0}', space=vmem, size = 0x2000, scoped, tag = 'output window, operand 0, single buffered']
    %10 = vsyncpa [#allocation4], 0
    %11 = vsyncpa [#allocation7], 0
    %12 = vsyncpa [#allocation5], 0
    // Predicated region
    $region2: #{tpu_custom_call.1} parent=1 // pred_check
      _
    $region3: #{tpu_custom_call.1} parent=1 // pred_check_branch
      %14 = sbr.rel (0) target = $region5
    $region4: #{tpu_custom_call.1} parent=1 // pred_region
      %s16 = ssub.s32 256, 256
      %17 = vsyncadd [#allocation4], %s16
      %s18 = sshll.u32 [#allocation3], 4
      %s19 = int_to_ptr.vmem [resolvable:$true] %s18
      %24 = dma.hbm_to_vmem [thread:$0]  %s0, 256, %s19, [#allocation4], 128, 128, 8
    $region5: #{tpu_custom_call.1} parent=1 // pred_fallthru
      _
    // Predicated region
    $region6: #{tpu_custom_call.1} parent=1 // pred_check
      _
    $region7: #{tpu_custom_call.1} parent=1 // pred_check_branch
      %26 = sbr.rel (0) target = $region9
    $region8: #{tpu_custom_call.1} parent=1 // pred_region
      %s28 = ssub.s32 1024, 1024
      %29 = vsyncadd [#allocation7], %s28
      %s30 = sshll.u32 [#allocation6], 4
      %s31 = int_to_ptr.vmem [resolvable:$true] %s30
      %36 = dma.hbm_to_vmem [thread:$0]  %s1, 1024, %s31, [#allocation7], 64, 64, 4
    $region9: #{tpu_custom_call.1} parent=1 // pred_fallthru
      _
    // Predicated region
    $region10: #{tpu_custom_call.1} parent=1 // pred_check
      _
    $region11: #{tpu_custom_call.1} parent=1 // pred_check_branch
      %38 = sbr.rel (0) target = $region13
    $region12: #{tpu_custom_call.1} parent=1 // pred_region
      _
    $region13: #{tpu_custom_call.1} parent=1 // pred_fallthru
      _
    // Predicated region
    $region14: #{tpu_custom_call.1} parent=1 // pred_check
      _
    $region15: #{tpu_custom_call.1} parent=1 // pred_check_branch
      %40 = sbr.rel (0) target = $region17
    $region16: #{tpu_custom_call.1} parent=1 // pred_region
      %s42 = ssub.s32 1024, 1024
      %43 = vsyncadd [#allocation7], %s42
      %s44 = sshll.u32 [#allocation8], 4
      %s45 = int_to_ptr.vmem [resolvable:$true] %s44
      %50 = dma.hbm_to_vmem [thread:$0]  %s3, 1024, %s45, [#allocation7], 64, 64, 4
    $region17: #{tpu_custom_call.1} parent=1 // pred_fallthru
      _
    // Predicated region
    $region18: #{tpu_custom_call.1} parent=1 // pred_check
      _
    $region19: #{tpu_custom_call.1} parent=1 // pred_check_branch
      %52 = sbr.rel (0) target = $region21
    $region20: #{tpu_custom_call.1} parent=1 // pred_region
      _
    $region21: #{tpu_custom_call.1} parent=1 // pred_fallthru
      _
    // Predicated region
    $region22: #{tpu_custom_call.1} parent=1 // pred_check
      _
    $region23: #{tpu_custom_call.1} parent=1 // pred_check_branch
      %54 = sbr.rel (0) target = $region25
    $region24: #{tpu_custom_call.1} parent=1 // pred_region
      %55 = dma.done [#allocation4], 256
    $region25: #{tpu_custom_call.1} parent=1 // pred_fallthru
      _
    // Predicated region
    $region26: #{tpu_custom_call.1} parent=1 // pred_check
      _
    $region27: #{tpu_custom_call.1} parent=1 // pred_check_branch
      %57 = sbr.rel (0) target = $region29
    $region28: #{tpu_custom_call.1} parent=1 // pred_region
      %58 = dma.done [#allocation7], 1024
    $region29: #{tpu_custom_call.1} parent=1 // pred_fallthru
      _
    // Predicated region
    $region30: #{tpu_custom_call.1} parent=1 // pred_check
      _
    $region31: #{tpu_custom_call.1} parent=1 // pred_check_branch
      %60 = sbr.rel (0) target = $region33
    $region32: #{tpu_custom_call.1} parent=1 // pred_region
      %61 = dma.done [#allocation7], 1024
    $region33: #{tpu_custom_call.1} parent=1 // pred_fallthru
      _
    %v63 = vld [vmem:[#allocation3] sm:$0xff]
    %v64 = vld [vmem:[#allocation3 + $0x8] sm:$0xff]
    %v65 = vpack.c.bf16 %v64, %v63
    %v66 = vld [vmem:[#allocation6] sm:$0xf]
    %v67 = vld [vmem:[#allocation6 + $0x4] sm:$0xf]
    %v68 = vld [vmem:[#allocation6 + $0x8] sm:$0xf]
    %v69 = vld [vmem:[#allocation6 + $0xc] sm:$0xf]
    %v70 = vld [vmem:[#allocation6 + $0x10] sm:$0xf]
    %v71 = vld [vmem:[#allocation6 + $0x14] sm:$0xf]
    %v72 = vld [vmem:[#allocation6 + $0x18] sm:$0xf]
    %v73 = vld [vmem:[#allocation6 + $0x1c] sm:$0xf]
    %v74 = vld [vmem:[#allocation6 + $0x20] sm:$0xf]
    %v75 = vld [vmem:[#allocation6 + $0x24] sm:$0xf]
    %v76 = vld [vmem:[#allocation6 + $0x28] sm:$0xf]
    %v77 = vld [vmem:[#allocation6 + $0x2c] sm:$0xf]
    %v78 = vld [vmem:[#allocation6 + $0x30] sm:$0xf]
    %v79 = vld [vmem:[#allocation6 + $0x34] sm:$0xf]
    %v80 = vld [vmem:[#allocation6 + $0x38] sm:$0xf]
    %v81 = vld [vmem:[#allocation6 + $0x3c] sm:$0xf]
    %v82 = vld [vmem:[%s2] sm:$0x1]
    %v84 = vlaneseq
    %v85 = vshrl.u32 %v84, 7
    %v86 = vsub.s32 0, %v85
    %v87 = vrot.slane %v82, %v86
    %v105 = vunpack.c.l.b16 %v66
    %v106 = vunpack.c.l.b16 %v67
    %v107 = vunpack.c.l.b16 %v68
    %v108 = vunpack.c.l.b16 %v69
    %v109 = vunpack.c.l.b16 %v70
    %v110 = vunpack.c.l.b16 %v71
    %v111 = vunpack.c.l.b16 %v72
    %v112 = vunpack.c.l.b16 %v73
    %v113 = vunpack.c.l.b16 %v74
    %v114 = vunpack.c.l.b16 %v75
    %v115 = vunpack.c.l.b16 %v76
    %v116 = vunpack.c.l.b16 %v77
    %v117 = vunpack.c.l.b16 %v78
    %v118 = vunpack.c.l.b16 %v79
    %v119 = vunpack.c.l.b16 %v80
    %v120 = vunpack.c.l.b16 %v81
    %v121 = vpack.c.b16 %v106, %v105
    %v122 = vpack.c.b16 %v108, %v107
    %v123 = vpack.c.b16 %v110, %v109
    %v124 = vpack.c.b16 %v112, %v111
    %v125 = vpack.c.b16 %v114, %v113
    %v126 = vpack.c.b16 %v116, %v115
    %v127 = vpack.c.b16 %v118, %v117
    %v128 = vpack.c.b16 %v120, %v119
    %137 = vmatprep.subr.bf16.mxu0 0
    %138 = vmatpush1.bf16.msra.mxu0 %v128
    %139 = vmatprep.subr.bf16.mxu0 0
    %140 = vmatpush1.bf16.msra.mxu0 %v127
    %141 = vmatprep.subr.bf16.mxu0 0
    %142 = vmatpush1.bf16.msra.mxu0 %v126
    %143 = vmatprep.subr.bf16.mxu0 0
    %144 = vmatpush1.bf16.msra.mxu0 %v125
    %145 = vmatprep.subr.bf16.mxu0 0
    %146 = vmatpush1.bf16.msra.mxu0 %v124
    %147 = vmatprep.subr.bf16.mxu0 0
    %148 = vmatpush1.bf16.msra.mxu0 %v123
    %149 = vmatprep.subr.bf16.mxu0 0
    %150 = vmatpush1.bf16.msra.mxu0 %v122
    %151 = vmatprep.subr.bf16.mxu0 0
    %152 = vmatpush1.bf16.msra.mxu0 %v121
    %153 = vmatprep.subr.bf16.mxu0 0
    %154 = vmatpush2.bf16.msra.mxu0 0
    %155 = vmatprep.subr.bf16.mxu0 0
    %156 = vmatpush2.bf16.msra.mxu0 0
    %157 = vmatprep.subr.bf16.mxu0 0
    %158 = vmatpush2.bf16.msra.mxu0 0
    %159 = vmatprep.subr.bf16.mxu0 0
    %160 = vmatpush2.bf16.msra.mxu0 0
    %161 = vmatprep.subr.bf16.mxu0 0
    %162 = vmatpush2.bf16.msra.mxu0 0
    %163 = vmatprep.subr.bf16.mxu0 0
    %164 = vmatpush2.bf16.msra.mxu0 0
    %165 = vmatprep.subr.bf16.mxu0 0
    %166 = vmatpush2.bf16.msra.mxu0 0
    %167 = vmatprep.subr.bf16.mxu0 0
    %168 = vmatpush2.bf16.msra.mxu0 0
    %169 = vmatprep.mubr.bf16.mxu0 0
    %170 = vmatmul.mubr.bf16.gmra.mxu0 %v65
    %v171 = vpop.f32.mrf.mxu0
    %v172 = vadd.f32 %v87, %v171
    %v173 = vpop.f32.mrf.mxu0
    %v174 = vpop.f32.mrf.mxu0
    %v175 = vadd.f32 %v87, %v174
    %v176 = vpop.f32.mrf.mxu0
    %177 = vdwg.mxu0
    %v178 = vmax.f32 %v172, 0.0
    %v179 = vmax.f32 %v175, 0.0
    %v180 = vpack.c.bf16 %v179, %v178
    %v181 = vld [vmem:[#allocation8] sm:$0xf]
    %v182 = vld [vmem:[#allocation8 + $0x4] sm:$0xf]
    %v183 = vld [vmem:[#allocation8 + $0x8] sm:$0xf]
    %v184 = vld [vmem:[#allocation8 + $0xc] sm:$0xf]
    %v185 = vld [vmem:[#allocation8 + $0x10] sm:$0xf]
    %v186 = vld [vmem:[#allocation8 + $0x14] sm:$0xf]
    %v187 = vld [vmem:[#allocation8 + $0x18] sm:$0xf]
    %v188 = vld [vmem:[#allocation8 + $0x1c] sm:$0xf]
    %v189 = vld [vmem:[#allocation8 + $0x20] sm:$0xf]
    %v190 = vld [vmem:[#allocation8 + $0x24] sm:$0xf]
    %v191 = vld [vmem:[#allocation8 + $0x28] sm:$0xf]
    %v192 = vld [vmem:[#allocation8 + $0x2c] sm:$0xf]
    %v193 = vld [vmem:[#allocation8 + $0x30] sm:$0xf]
    %v194 = vld [vmem:[#allocation8 + $0x34] sm:$0xf]
    %v195 = vld [vmem:[#allocation8 + $0x38] sm:$0xf]
    %v196 = vld [vmem:[#allocation8 + $0x3c] sm:$0xf]
    %v213 = vunpack.c.l.b16 %v181
    %v214 = vunpack.c.l.b16 %v182
    %v215 = vunpack.c.l.b16 %v183
    %v216 = vunpack.c.l.b16 %v184
    %v217 = vunpack.c.l.b16 %v185
    %v218 = vunpack.c.l.b16 %v186
    %v219 = vunpack.c.l.b16 %v187
    %v220 = vunpack.c.l.b16 %v188
    %v221 = vunpack.c.l.b16 %v189
    %v222 = vunpack.c.l.b16 %v190
    %v223 = vunpack.c.l.b16 %v191
    %v224 = vunpack.c.l.b16 %v192
    %v225 = vunpack.c.l.b16 %v193
    %v226 = vunpack.c.l.b16 %v194
    %v227 = vunpack.c.l.b16 %v195
    %v228 = vunpack.c.l.b16 %v196
    %v229 = vpack.c.b16 %v214, %v213
    %v230 = vpack.c.b16 %v216, %v215
    %v231 = vpack.c.b16 %v218, %v217
    %v232 = vpack.c.b16 %v220, %v219
    %v233 = vpack.c.b16 %v222, %v221
    %v234 = vpack.c.b16 %v224, %v223
    %v235 = vpack.c.b16 %v226, %v225
    %v236 = vpack.c.b16 %v228, %v227
    %245 = vmatprep.subr.bf16.mxu0 0
    %246 = vmatpush1.bf16.msra.mxu0 %v236
    %247 = vmatprep.subr.bf16.mxu0 0
    %248 = vmatpush1.bf16.msra.mxu0 %v235
    %249 = vmatprep.subr.bf16.mxu0 0
    %250 = vmatpush1.bf16.msra.mxu0 %v234
    %251 = vmatprep.subr.bf16.mxu0 0
    %252 = vmatpush1.bf16.msra.mxu0 %v233
    %253 = vmatprep.subr.bf16.mxu0 0
    %254 = vmatpush1.bf16.msra.mxu0 %v232
    %255 = vmatprep.subr.bf16.mxu0 0
    %256 = vmatpush1.bf16.msra.mxu0 %v231
    %257 = vmatprep.subr.bf16.mxu0 0
    %258 = vmatpush1.bf16.msra.mxu0 %v230
    %259 = vmatprep.subr.bf16.mxu0 0
    %260 = vmatpush1.bf16.msra.mxu0 %v229
    %261 = vmatprep.subr.bf16.mxu0 0
    %262 = vmatpush2.bf16.msra.mxu0 0
    %263 = vmatprep.subr.bf16.mxu0 0
    %264 = vmatpush2.bf16.msra.mxu0 0
    %265 = vmatprep.subr.bf16.mxu0 0
    %266 = vmatpush2.bf16.msra.mxu0 0
    %267 = vmatprep.subr.bf16.mxu0 0
    %268 = vmatpush2.bf16.msra.mxu0 0
    %269 = vmatprep.subr.bf16.mxu0 0
    %270 = vmatpush2.bf16.msra.mxu0 0
    %271 = vmatprep.subr.bf16.mxu0 0
    %272 = vmatpush2.bf16.msra.mxu0 0
    %273 = vmatprep.subr.bf16.mxu0 0
    %274 = vmatpush2.bf16.msra.mxu0 0
    %275 = vmatprep.subr.bf16.mxu0 0
    %276 = vmatpush2.bf16.msra.mxu0 0
    %277 = vmatprep.mubr.bf16.mxu0 0
    %278 = vmatmul.mubr.bf16.gmra.mxu0 %v180
    %v279 = vpop.f32.mrf.mxu0
    %v280 = vadd.f32 0.0, %v279
    %v281 = vpop.f32.mrf.mxu0
    %v282 = vpop.f32.mrf.mxu0
    %v283 = vadd.f32 0.0, %v282
    %v284 = vpop.f32.mrf.mxu0
    %285 = vdwg.mxu0
    %p286 = scmp.eq.s32.totalorder 0, 0
    // Predicated region
    $region34: #{tpu_custom_call.1} parent=1 // pred_check
      %p287 = pneg %p286
    $region35: #{tpu_custom_call.1} parent=1 // pred_check_branch
      %289 = sbr.rel (%p287) target = $region37
    $region36: #{tpu_custom_call.1} parent=1 // pred_region
      %290 = vst [vmem:[#allocation2] sm:$0xff] 0.0
      %291 = vst [vmem:[#allocation2 + $0x8] sm:$0xff] 0.0
    $region37: #{tpu_custom_call.1} parent=1 // pred_fallthru
      _
    %v292 = vld [vmem:[#allocation2] sm:$0xff]
    %v293 = vld [vmem:[#allocation2 + $0x8] sm:$0xff]
    %v294 = vadd.f32 %v292, %v280
    %v295 = vadd.f32 %v293, %v283
    %296 = vst [vmem:[#allocation2] sm:$0xff] %v294
    %297 = vst [vmem:[#allocation2 + $0x8] sm:$0xff] %v295
    // Predicated region
    $region38: #{tpu_custom_call.1} parent=1 // pred_check
      %p298 = pneg %p286
    $region39: #{tpu_custom_call.1} parent=1 // pred_check_branch
      %300 = sbr.rel (%p298) target = $region41
    $region40: #{tpu_custom_call.1} parent=1 // pred_region
      %v301 = vld [vmem:[#allocation3] sm:$0xff]
      %v302 = vld [vmem:[#allocation3 + $0x8] sm:$0xff]
      %v303 = vld [vmem:[%s4] sm:$0x1]
      %v304 = vld [vmem:[%s4 + $0x1] sm:$0x1]
      %v305 = vld [vmem:[%s4 + $0x2] sm:$0x1]
      %v306 = vld [vmem:[#allocation2] sm:$0xff]
      %v307 = vld [vmem:[#allocation2 + $0x8] sm:$0xff]
      %v308 = vlaneseq
      %v309 = vshrl.u32 %v308, 7
      %v310 = vsub.s32 0, %v309
      %v311 = vrot.slane %v303, %v310
      %v312 = vadd.f32 %v306, %v311
      %v313 = vadd.f32 %v307, %v311
      %v314 = vadd.f32 %v312, %v301
      %v315 = vadd.f32 %v313, %v302
      %316 = vadd.xlane.f32.xlu0 %v314
      %v317 = vpop.xlane.xlu0 %316
      %318 = vadd.xlane.f32.xlu0 %v315
      %v319 = vpop.xlane.xlu0 %318
      %v320 = vmul.f32 %v317, 0.03125
      %v321 = vmul.f32 %v319, 0.03125
      %v322 = vsub.f32 %v314, %v320
      %v323 = vsub.f32 %v315, %v321
      %v324 = vlaneseq
      %v325 = vand.u32 %v324, 127
      %vm326 = vcmp.lt.s32.totalorder %v325, 32
      %v327 = vsel %vm326, %v322, 0.0
      %v328 = vsel %vm326, %v323, 0.0
      %v329 = vmul.f32 %v327, %v327
      %v330 = vmul.f32 %v328, %v328
      %331 = vadd.xlane.f32.xlu0 %v329
      %v332 = vpop.xlane.xlu0 %331
      %333 = vadd.xlane.f32.xlu0 %v330
      %v334 = vpop.xlane.xlu0 %333
      %v335 = vmul.f32 %v332, 0.03125
      %v336 = vmul.f32 %v334, 0.03125
      %v337 = vadd.f32 %v335, 1e-05
      %v338 = vadd.f32 %v336, 1e-05
      %v339 = vrsqrt.pop %v337
      %v340 = vrsqrt.pop %v338
      %v341 = vmul.f32 %v327, %v339
      %v342 = vmul.f32 %v328, %v340
      %v343 = vlaneseq
      %v344 = vshrl.u32 %v343, 7
      %v345 = vsub.s32 0, %v344
      %v346 = vrot.slane %v304, %v345
      %v347 = vmul.f32 %v341, %v346
      %v348 = vmul.f32 %v342, %v346
      %v349 = vlaneseq
      %v350 = vshrl.u32 %v349, 7
      %v351 = vsub.s32 0, %v350
      %v352 = vrot.slane %v305, %v351
      %v353 = vadd.f32 %v347, %v352
      %v354 = vadd.f32 %v348, %v352
      %355 = vst [vmem:[#allocation9] sm:$0xff] %v353
      %356 = vst [vmem:[#allocation9 + $0x8] sm:$0xff] %v354
    $region41: #{tpu_custom_call.1} parent=1 // pred_fallthru
      _
    // Predicated region
    $region42: #{tpu_custom_call.1} parent=1 // pred_check
      _
    $region43: #{tpu_custom_call.1} parent=1 // pred_check_branch
      %358 = sbr.rel (0) target = $region45
    $region44: #{tpu_custom_call.1} parent=1 // pred_region
      %s360 = ssub.s32 256, 256
      %361 = vsyncadd [#allocation5], %s360
      %s362 = sshll.u32 [#allocation9], 4
      %s363 = int_to_ptr.vmem [resolvable:$true] %s362
      %368 = dma.vmem_to_hbm [thread:$0]  %s363, 256, %s5, [#allocation5], 128, 128, 8
    $region45: #{tpu_custom_call.1} parent=1 // pred_fallthru
      _
    // Predicated region
    $region46: #{tpu_custom_call.1} parent=1 // pred_check
      _
    $region47: #{tpu_custom_call.1} parent=1 // pred_check_branch
      %370 = sbr.rel (0) target = $region49
    $region48: #{tpu_custom_call.1} parent=1 // pred_region
      %371 = dma.done [#allocation5], 256
    $region49: #{tpu_custom_call.1} parent=1 // pred_fallthru
      _
    %372 = vsyncpa [#allocation4], 1
    %373 = vsyncpa [#allocation7], 1
    %374 = vsyncpa [#allocation5], 1

</llo_original>
